<compile_context>
chip_gen: v5e
topology: v5e:2x2
jax: 0.10.0
libtpu: 0.0.40
codegen_flags: <defaults>
</compile_context>

<pallas_src>
import numpy as np
import jax
import jax.numpy as jnp
from jax.experimental import pallas as pl
from jax.experimental.pallas import tpu as pltpu


# ---------------------------------------------------------------------------
# Kernels
# ---------------------------------------------------------------------------
def _make_small_c_kernel(C):
    """Unrolled VPU broadcast-FMA kernel for small channel counts (C <= 8)."""

    def kernel(x_ref, w_ref, b_ref, o_ref):
        # x_ref: (1, C, T) VMEM tile (NCHW, spatial on lanes).
        # w_ref: (C, C) f32 in SMEM.  b_ref: (C,) f32 in SMEM.
        xs = [x_ref[0, k:k + 1, :].astype(jnp.float32) for k in range(C)]
        for o in range(C):
            acc = xs[0] * w_ref[o, 0] + b_ref[o]
            for k in range(1, C):
                acc = acc + w_ref[o, k] * xs[k]
            o_ref[0, o:o + 1, :] = acc.astype(o_ref.dtype)

    return kernel


def _fused_kernel_mxu(x_ref, w_ref, b_ref, o_ref):
    # x_ref: (1, C, T) VMEM tile; w_ref: (C, C) f32 VMEM; b_ref: (C, 1) f32 VMEM.
    acc = jnp.dot(w_ref[...], x_ref[0], preferred_element_type=jnp.float32)
    o_ref[0] = (acc + b_ref[...]).astype(o_ref.dtype)


# ---------------------------------------------------------------------------
# Wrapper
# ---------------------------------------------------------------------------
def _round_up(a, b):
    return ((a + b - 1) // b) * b


def _choose_tile(hw, c, itemsize, budget_bytes):
    """Largest legal lane tile whose double-buffered in+out fits the budget."""
    max_lanes = budget_bytes // (4 * c * itemsize)   # 2x input + 2x output bufs
    if hw <= max_lanes:
        return hw                                    # full extent is always legal
    return max(128, (max_lanes // 128) * 128)


def fused_conv_bn_conv(x_nchw, w1, b1, running_mean, running_var, gamma, beta,
                       w2, b2, *, eps=1e-5, tile_hw=None,
                       vmem_budget_bytes=16 * 1024 * 1024, out_dtype=None):
    """Fused 1x1Conv -> BatchNorm2d(eval) -> 1x1Conv.

    x_nchw: (N, C, H, W);  w1, w2: (C_out, C_in);  b1, b2: (C,).
    Eval-mode BatchNorm only (running statistics, no stat update).
    """
    N, C, H, W = x_nchw.shape
    HW = H * W
    f32 = jnp.float32
    out_dtype = x_nchw.dtype if out_dtype is None else out_dtype

    # ---- fold all three affine stages into one weight + bias (f32, one-time) ----
    inv_std = 1.0 / jnp.sqrt(running_var.astype(f32) + eps)
    scale = gamma.astype(f32) * inv_std                              # (C,)
    shift = beta.astype(f32) - running_mean.astype(f32) * scale
    w1f = w1.astype(f32)
    w2f = w2.astype(f32)
    wc = w2f @ (scale[:, None] * w1f)                                # (C, C)
    bc = w2f @ (scale * b1.astype(f32) + shift) + b2.astype(f32)     # (C,)

    # ---- layout: keep NCHW, spatial (H*W) on the lane axis; no extra copies ----
    x3 = x_nchw.reshape(N, C, HW)

    itemsize = max(x_nchw.dtype.itemsize, np.dtype(out_dtype).itemsize)
    if tile_hw is None:
        tile = _choose_tile(HW, C, itemsize, vmem_budget_bytes)
    else:
        tile = _round_up(max(int(tile_hw), 128), 128)   # never violate lane-128 rule
        if tile >= HW:
            tile = HW
    n_hw = pl.cdiv(HW, tile)
    if N * n_hw < 2 and HW > 128:
        # Keep >= 2 grid steps so megacore / dual-TC (v7x) gets work.
        tile = max(128, _round_up(pl.cdiv(HW, 2), 128))
        n_hw = pl.cdiv(HW, tile)

    # Explicit VMEM limit: double-buffered in+out tiles + weights + headroom.
    tile_in_bytes = C * tile * x_nchw.dtype.itemsize
    tile_out_bytes = C * tile * np.dtype(out_dtype).itemsize
    vmem_bytes = 2 * (tile_in_bytes + tile_out_bytes) + 8 * C * (C + 1) + (4 << 20)
    vmem_bytes = int(min(max(vmem_bytes, 8 << 20), 48 << 20))

    if C <= 8:
        # VPU broadcast-FMA path; weights/bias live in SMEM as scalars.
        kernel = _make_small_c_kernel(C)
        in_specs = [
            pl.BlockSpec((1, C, tile), lambda n, j: (n, 0, j)),          # x tile
            pl.BlockSpec(memory_space=pltpu.MemorySpace.SMEM),           # wc (C,C)
            pl.BlockSpec(memory_space=pltpu.MemorySpace.SMEM),           # bc (C,)
        ]
        operands = (x3, wc, bc)
    else:
        # MXU path for larger channel counts.
        # TODO(synk): for production C >= 512, add output-channel / K-reduction
        # grid axes with a VMEM f32 accumulator instead of a resident (C, C)
        # weight (v7x has only 64 MiB physical / 32 MiB scoped VMEM per core).
        kernel = _fused_kernel_mxu
        in_specs = [
            pl.BlockSpec((1, C, tile), lambda n, j: (n, 0, j)),          # x tile
            pl.BlockSpec((C, C), lambda n, j: (0, 0)),                   # wc
            pl.BlockSpec((C, 1), lambda n, j: (0, 0)),                   # bc
        ]
        operands = (x3, wc, bc.reshape(C, 1))

    out = pl.pallas_call(
        kernel,
        out_shape=jax.ShapeDtypeStruct((N, C, HW), out_dtype),
        grid_spec=pltpu.PrefetchScalarGridSpec(
            num_scalar_prefetch=0,
            grid=(N, n_hw),
            in_specs=in_specs,
            out_specs=pl.BlockSpec((1, C, tile), lambda n, j: (n, 0, j)),
        ),
        compiler_params=pltpu.CompilerParams(
            dimension_semantics=("parallel", "parallel"),
            vmem_limit_bytes=vmem_bytes),
    )(*operands)

    return out.reshape(N, C, H, W)


# ---------------------------------------------------------------------------
# Pure-JAX reference (identical eval-mode semantics)
# ---------------------------------------------------------------------------
def _ref_forward(x_nchw, w1, b1, rm, rv, gamma, beta, w2, b2, eps=1e-5):
    x = jnp.einsum('oc,nchw->nohw', w1, x_nchw) + b1[None, :, None, None]
    x = (x - rm[None, :, None, None]) / jnp.sqrt(rv[None, :, None, None] + eps)
    x = x * gamma[None, :, None, None] + beta[None, :, None, None]
    x = jnp.einsum('oc,nchw->nohw', w2, x) + b2[None, :, None, None]
    return x


if __name__ == "__main__":
    key = jax.random.PRNGKey(0)

    def make_params(k, C):
        k1, k2, k3, k4 = jax.random.split(k, 4)
        bound = 1.0 / float(np.sqrt(C))
        w1 = jax.random.uniform(k1, (C, C), jnp.float32, -bound, bound)
        b1 = jax.random.uniform(k2, (C,), jnp.float32, -bound, bound)
        w2 = jax.random.uniform(k3, (C, C), jnp.float32, -bound, bound)
        b2 = jax.random.uniform(k4, (C,), jnp.float32, -bound, bound)
        gamma = jnp.ones((C,), jnp.float32)
        beta = jnp.zeros((C,), jnp.float32)
        rm = jnp.arange(C, dtype=jnp.float32) / 1000.0   # as in the PyTorch module
        rv = jnp.arange(C, dtype=jnp.float32) / 1000.0
        return w1, b1, rm, rv, gamma, beta, w2, b2

    # --- Test 1: module shapes (in_channels=4), small spatial, VPU path -----
    kx, kp, key = jax.random.split(key, 3)
    N, C, H, W = 2, 4, 16, 16
    x = jax.random.normal(kx, (N, C, H, W), jnp.float32)
    params = make_params(kp, C)
    ref = _ref_forward(x, *params)
    out = jax.block_until_ready(fused_conv_bn_conv(x, *params))
    assert out.shape == (N, C, H, W)
    assert jnp.allclose(out, ref, atol=3e-3, rtol=2e-3), "C=4 default-tile mismatch"

    # --- Test 2: multi-tile grid with ragged last spatial block (HW=400) ----
    kx, kp, key = jax.random.split(key, 3)
    x2 = jax.random.normal(kx, (2, 4, 20, 20), jnp.float32)
    params2 = make_params(kp, 4)
    ref2 = _ref_forward(x2, *params2)
    out2 = jax.block_until_ready(fused_conv_bn_conv(x2, *params2, tile_hw=128))
    assert jnp.allclose(out2, ref2, atol=3e-3, rtol=2e-3), "ragged-tile mismatch"

    # --- Test 3: larger channel count exercises the MXU path -----------------
    kx, kp, key = jax.random.split(key, 3)
    x3 = jax.random.normal(kx, (2, 16, 16, 16), jnp.float32)
    params3 = make_params(kp, 16)
    ref3 = _ref_forward(x3, *params3)
    out3 = jax.block_until_ready(fused_conv_bn_conv(x3, *params3))
    assert jnp.allclose(out3, ref3, atol=3e-3, rtol=2e-3), "C=16 MXU-path mismatch"

    print("KERNEL_OK")
</pallas_src>

<mosaic_0001>
module attributes {stable_mosaic.version = 11 : i64} {
  func.func @kernel(%arg0: i32, %arg1: i32, %arg2: memref<1x4x256xf32, #tpu.memory_space<vmem>>, %arg3: memref<4x4xf32, #tpu.memory_space<smem>>, %arg4: memref<4xf32, #tpu.memory_space<smem>>, %arg5: memref<1x4x256xf32, #tpu.memory_space<vmem>>) attributes {dimension_semantics = [#tpu.dimension_semantics<parallel>, #tpu.dimension_semantics<parallel>], iteration_bounds = array<i64: 2, 1>, scalar_prefetch = 0 : i64, scratch_operands = 0 : i64, tpu.core_type = #tpu.core_type<tc>, window_params = [{transform_indices = @transform_0, window_bounds = array<i64: 1, 4, 256>}, {transform_indices = @transform_1, window_bounds = array<i64: 4, 4>}, {transform_indices = @transform_2, window_bounds = array<i64: 4>}, {transform_indices = @transform_3, window_bounds = array<i64: 1, 4, 256>}]} {
    %c0 = arith.constant 0 : index
    %c0_0 = arith.constant 0 : index
    %c0_1 = arith.constant 0 : index
    %0 = vector.load %arg2[%c0, %c0_0, %c0_1] : memref<1x4x256xf32, #tpu.memory_space<vmem>>, vector<1x1x256xf32>
    %1 = vector.shape_cast %0 : vector<1x1x256xf32> to vector<1x256xf32>
    %c0_2 = arith.constant 0 : index
    %c1 = arith.constant 1 : index
    %c0_3 = arith.constant 0 : index
    %2 = vector.load %arg2[%c0_2, %c1, %c0_3] : memref<1x4x256xf32, #tpu.memory_space<vmem>>, vector<1x1x256xf32>
    %3 = vector.shape_cast %2 : vector<1x1x256xf32> to vector<1x256xf32>
    %c0_4 = arith.constant 0 : index
    %c2 = arith.constant 2 : index
    %c0_5 = arith.constant 0 : index
    %4 = vector.load %arg2[%c0_4, %c2, %c0_5] : memref<1x4x256xf32, #tpu.memory_space<vmem>>, vector<1x1x256xf32>
    %5 = vector.shape_cast %4 : vector<1x1x256xf32> to vector<1x256xf32>
    %c0_6 = arith.constant 0 : index
    %c3 = arith.constant 3 : index
    %c0_7 = arith.constant 0 : index
    %6 = vector.load %arg2[%c0_6, %c3, %c0_7] : memref<1x4x256xf32, #tpu.memory_space<vmem>>, vector<1x1x256xf32>
    %7 = vector.shape_cast %6 : vector<1x1x256xf32> to vector<1x256xf32>
    %c0_8 = arith.constant 0 : index
    %c0_9 = arith.constant 0 : index
    %8 = memref.load %arg3[%c0_8, %c0_9] : memref<4x4xf32, #tpu.memory_space<smem>>
    %9 = vector.broadcast %8 : f32 to vector<1x256xf32>
    %10 = arith.mulf %1, %9 : vector<1x256xf32>
    %c0_10 = arith.constant 0 : index
    %11 = memref.load %arg4[%c0_10] : memref<4xf32, #tpu.memory_space<smem>>
    %12 = vector.broadcast %11 : f32 to vector<1x256xf32>
    %13 = arith.addf %10, %12 : vector<1x256xf32>
    %c0_11 = arith.constant 0 : index
    %c1_12 = arith.constant 1 : index
    %14 = memref.load %arg3[%c0_11, %c1_12] : memref<4x4xf32, #tpu.memory_space<smem>>
    %15 = vector.broadcast %14 : f32 to vector<1x256xf32>
    %16 = arith.mulf %15, %3 : vector<1x256xf32>
    %17 = arith.addf %13, %16 : vector<1x256xf32>
    %c0_13 = arith.constant 0 : index
    %c2_14 = arith.constant 2 : index
    %18 = memref.load %arg3[%c0_13, %c2_14] : memref<4x4xf32, #tpu.memory_space<smem>>
    %19 = vector.broadcast %18 : f32 to vector<1x256xf32>
    %20 = arith.mulf %19, %5 : vector<1x256xf32>
    %21 = arith.addf %17, %20 : vector<1x256xf32>
    %c0_15 = arith.constant 0 : index
    %c3_16 = arith.constant 3 : index
    %22 = memref.load %arg3[%c0_15, %c3_16] : memref<4x4xf32, #tpu.memory_space<smem>>
    %23 = vector.broadcast %22 : f32 to vector<1x256xf32>
    %24 = arith.mulf %23, %7 : vector<1x256xf32>
    %25 = arith.addf %21, %24 : vector<1x256xf32>
    %c0_17 = arith.constant 0 : index
    %c0_18 = arith.constant 0 : index
    %c0_19 = arith.constant 0 : index
    %26 = vector.load %arg5[%c0_17, %c0_18, %c0_19] : memref<1x4x256xf32, #tpu.memory_space<vmem>>, vector<1x1x256xf32>
    %27 = vector.shape_cast %26 : vector<1x1x256xf32> to vector<1x256xf32>
    %28 = vector.shape_cast %25 : vector<1x256xf32> to vector<1x1x256xf32>
    tpu.vector_store %arg5[%c0_17, %c0_18, %c0_19], %28 {strides = array<i32>} : memref<1x4x256xf32, #tpu.memory_space<vmem>>, vector<1x1x256xf32>,
    %c1_20 = arith.constant 1 : index
    %c0_21 = arith.constant 0 : index
    %29 = memref.load %arg3[%c1_20, %c0_21] : memref<4x4xf32, #tpu.memory_space<smem>>
    %30 = vector.broadcast %29 : f32 to vector<1x256xf32>
    %31 = arith.mulf %1, %30 : vector<1x256xf32>
    %c1_22 = arith.constant 1 : index
    %32 = memref.load %arg4[%c1_22] : memref<4xf32, #tpu.memory_space<smem>>
    %33 = vector.broadcast %32 : f32 to vector<1x256xf32>
    %34 = arith.addf %31, %33 : vector<1x256xf32>
    %c1_23 = arith.constant 1 : index
    %c1_24 = arith.constant 1 : index
    %35 = memref.load %arg3[%c1_23, %c1_24] : memref<4x4xf32, #tpu.memory_space<smem>>
    %36 = vector.broadcast %35 : f32 to vector<1x256xf32>
    %37 = arith.mulf %36, %3 : vector<1x256xf32>
    %38 = arith.addf %34, %37 : vector<1x256xf32>
    %c1_25 = arith.constant 1 : index
    %c2_26 = arith.constant 2 : index
    %39 = memref.load %arg3[%c1_25, %c2_26] : memref<4x4xf32, #tpu.memory_space<smem>>
    %40 = vector.broadcast %39 : f32 to vector<1x256xf32>
    %41 = arith.mulf %40, %5 : vector<1x256xf32>
    %42 = arith.addf %38, %41 : vector<1x256xf32>
    %c1_27 = arith.constant 1 : index
    %c3_28 = arith.constant 3 : index
    %43 = memref.load %arg3[%c1_27, %c3_28] : memref<4x4xf32, #tpu.memory_space<smem>>
    %44 = vector.broadcast %43 : f32 to vector<1x256xf32>
    %45 = arith.mulf %44, %7 : vector<1x256xf32>
    %46 = arith.addf %42, %45 : vector<1x256xf32>
    %c0_29 = arith.constant 0 : index
    %c1_30 = arith.constant 1 : index
    %c0_31 = arith.constant 0 : index
    %47 = vector.load %arg5[%c0_29, %c1_30, %c0_31] : memref<1x4x256xf32, #tpu.memory_space<vmem>>, vector<1x1x256xf32>
    %48 = vector.shape_cast %47 : vector<1x1x256xf32> to vector<1x256xf32>
    %49 = vector.shape_cast %46 : vector<1x256xf32> to vector<1x1x256xf32>
    tpu.vector_store %arg5[%c0_29, %c1_30, %c0_31], %49 {strides = array<i32>} : memref<1x4x256xf32, #tpu.memory_space<vmem>>, vector<1x1x256xf32>,
    %c2_32 = arith.constant 2 : index
    %c0_33 = arith.constant 0 : index
    %50 = memref.load %arg3[%c2_32, %c0_33] : memref<4x4xf32, #tpu.memory_space<smem>>
    %51 = vector.broadcast %50 : f32 to vector<1x256xf32>
    %52 = arith.mulf %1, %51 : vector<1x256xf32>
    %c2_34 = arith.constant 2 : index
    %53 = memref.load %arg4[%c2_34] : memref<4xf32, #tpu.memory_space<smem>>
    %54 = vector.broadcast %53 : f32 to vector<1x256xf32>
    %55 = arith.addf %52, %54 : vector<1x256xf32>
    %c2_35 = arith.constant 2 : index
    %c1_36 = arith.constant 1 : index
    %56 = memref.load %arg3[%c2_35, %c1_36] : memref<4x4xf32, #tpu.memory_space<smem>>
    %57 = vector.broadcast %56 : f32 to vector<1x256xf32>
    %58 = arith.mulf %57, %3 : vector<1x256xf32>
    %59 = arith.addf %55, %58 : vector<1x256xf32>
    %c2_37 = arith.constant 2 : index
    %c2_38 = arith.constant 2 : index
    %60 = memref.load %arg3[%c2_37, %c2_38] : memref<4x4xf32, #tpu.memory_space<smem>>
    %61 = vector.broadcast %60 : f32 to vector<1x256xf32>
    %62 = arith.mulf %61, %5 : vector<1x256xf32>
    %63 = arith.addf %59, %62 : vector<1x256xf32>
    %c2_39 = arith.constant 2 : index
    %c3_40 = arith.constant 3 : index
    %64 = memref.load %arg3[%c2_39, %c3_40] : memref<4x4xf32, #tpu.memory_space<smem>>
    %65 = vector.broadcast %64 : f32 to vector<1x256xf32>
    %66 = arith.mulf %65, %7 : vector<1x256xf32>
    %67 = arith.addf %63, %66 : vector<1x256xf32>
    %c0_41 = arith.constant 0 : index
    %c2_42 = arith.constant 2 : index
    %c0_43 = arith.constant 0 : index
    %68 = vector.load %arg5[%c0_41, %c2_42, %c0_43] : memref<1x4x256xf32, #tpu.memory_space<vmem>>, vector<1x1x256xf32>
    %69 = vector.shape_cast %68 : vector<1x1x256xf32> to vector<1x256xf32>
    %70 = vector.shape_cast %67 : vector<1x256xf32> to vector<1x1x256xf32>
    tpu.vector_store %arg5[%c0_41, %c2_42, %c0_43], %70 {strides = array<i32>} : memref<1x4x256xf32, #tpu.memory_space<vmem>>, vector<1x1x256xf32>,
    %c3_44 = arith.constant 3 : index
    %c0_45 = arith.constant 0 : index
    %71 = memref.load %arg3[%c3_44, %c0_45] : memref<4x4xf32, #tpu.memory_space<smem>>
    %72 = vector.broadcast %71 : f32 to vector<1x256xf32>
    %73 = arith.mulf %1, %72 : vector<1x256xf32>
    %c3_46 = arith.constant 3 : index
    %74 = memref.load %arg4[%c3_46] : memref<4xf32, #tpu.memory_space<smem>>
    %75 = vector.broadcast %74 : f32 to vector<1x256xf32>
    %76 = arith.addf %73, %75 : vector<1x256xf32>
    %c3_47 = arith.constant 3 : index
    %c1_48 = arith.constant 1 : index
    %77 = memref.load %arg3[%c3_47, %c1_48] : memref<4x4xf32, #tpu.memory_space<smem>>
    %78 = vector.broadcast %77 : f32 to vector<1x256xf32>
    %79 = arith.mulf %78, %3 : vector<1x256xf32>
    %80 = arith.addf %76, %79 : vector<1x256xf32>
    %c3_49 = arith.constant 3 : index
    %c2_50 = arith.constant 2 : index
    %81 = memref.load %arg3[%c3_49, %c2_50] : memref<4x4xf32, #tpu.memory_space<smem>>
    %82 = vector.broadcast %81 : f32 to vector<1x256xf32>
    %83 = arith.mulf %82, %5 : vector<1x256xf32>
    %84 = arith.addf %80, %83 : vector<1x256xf32>
    %c3_51 = arith.constant 3 : index
    %c3_52 = arith.constant 3 : index
    %85 = memref.load %arg3[%c3_51, %c3_52] : memref<4x4xf32, #tpu.memory_space<smem>>
    %86 = vector.broadcast %85 : f32 to vector<1x256xf32>
    %87 = arith.mulf %86, %7 : vector<1x256xf32>
    %88 = arith.addf %84, %87 : vector<1x256xf32>
    %c0_53 = arith.constant 0 : index
    %c3_54 = arith.constant 3 : index
    %c0_55 = arith.constant 0 : index
    %89 = vector.load %arg5[%c0_53, %c3_54, %c0_55] : memref<1x4x256xf32, #tpu.memory_space<vmem>>, vector<1x1x256xf32>
    %90 = vector.shape_cast %89 : vector<1x1x256xf32> to vector<1x256xf32>
    %91 = vector.shape_cast %88 : vector<1x256xf32> to vector<1x1x256xf32>
    tpu.vector_store %arg5[%c0_53, %c3_54, %c0_55], %91 {strides = array<i32>} : memref<1x4x256xf32, #tpu.memory_space<vmem>>, vector<1x1x256xf32>,
    return
  }
  func.func @transform_0(%arg0: i32, %arg1: i32) -> (i32, i32, i32) {
    %c0_i32 = arith.constant 0 : i32
    %c0_i32_0 = arith.constant 0 : i32
    return %arg0, %c0_i32, %arg1 : i32, i32, i32
  }
  func.func @transform_1(%arg0: i32, %arg1: i32) -> (i32, i32) {
    %c0_i32 = arith.constant 0 : i32
    %c0_i32_0 = arith.constant 0 : i32
    %c0_i32_1 = arith.constant 0 : i32
    return %c0_i32, %c0_i32_0 : i32, i32
  }
  func.func @transform_2(%arg0: i32, %arg1: i32) -> i32 {
    %c0_i32 = arith.constant 0 : i32
    %c0_i32_0 = arith.constant 0 : i32
    return %c0_i32 : i32
  }
  func.func @transform_3(%arg0: i32, %arg1: i32) -> (i32, i32, i32) {
    %c0_i32 = arith.constant 0 : i32
    %c0_i32_0 = arith.constant 0 : i32
    return %arg0, %c0_i32, %arg1 : i32, i32, i32
  }
}

</mosaic_0001>

<llo_original>
// kernel: tpu_custom_call.1
$region0: #{tpu_custom_call.1}
  #allocation0 [shape = 'u32[]', space=smem, size = 0x4, offset = 0x4, fixed_abs, tag = 'smem constant byte address 0x4 - core index']
  #allocation1 [shape = 'u32[72,128]{1,0:T(1,128)}', space=vmem, size = 0x9000, scoped, tag = 'internal scratch']
  %s0 = inlined_call_operand.hbm [shape: f32[2,4,256], index: 0, kind: input, shape index: {}]
  %s1 = inlined_call_operand.hbm [shape: f32[4,4], index: 1, kind: input, shape index: {}]
  %s2 = inlined_call_operand.vmem [shape: f32[4], index: 2, kind: input, shape index: {}]
  %s3 = inlined_call_operand.hbm [shape: f32[2,4,256], index: 3, kind: output, shape index: {}]
  %s4 = sld [smem:[#allocation0]]
  $region57: #{tpu_custom_call.1} parent=0
    _
  %s6 = ssub.s32 1, %s4
  %s7 = scalar_select 0, %s6, %s4
  $region1: #{tpu_custom_call.1} parent=0
    #allocation2 [shape = 'u8[8192]{0}', space=vmem, size = 0x2000, scoped, tag = 'input window, operand 0']
    #allocation3 [shape = 's32[2]{0}', space=sflag, size = 0x8, scoped, tag = 'scoped memory for tpu_custom_call.1']
    #allocation4 [shape = 's32[2]{0}', space=sflag, size = 0x8, scoped, tag = 'scoped memory for tpu_custom_call.1']
    #allocation5 [shape = 's32[2]{0}', space=sflag, size = 0x8, scoped, tag = 'scoped memory for tpu_custom_call.1']
    #allocation6 [shape = 's32[2]{0}', space=sflag, size = 0x8, scoped, tag = 'scoped memory for tpu_custom_call.1']
    #allocation7 [shape = 'u8[2048]{0}', space=smem, size = 0x800, scoped, tag = 'input window, operand 1, single buffered']
    #allocation8 [shape = 'u8[512]{0}', space=smem, size = 0x200, scoped, tag = 'input window, operand 2, single buffered']
    #allocation9 [shape = 'u8[8192]{0}', space=vmem, size = 0x2000, scoped, tag = 'output window, operand 0']
    %8 = vsyncpa [#allocation3], 0
    %s9 = scalar_lea.sflag [#allocation3], 1
    %10 = vsyncpa %s9, 0
    %11 = vsyncpa [#allocation5], 0
    %12 = vsyncpa [#allocation6], 0
    %13 = vsyncpa [#allocation4], 0
    %s14 = scalar_lea.sflag [#allocation4], 1
    %15 = vsyncpa %s14, 0
    loop: start=0, step=1, limit=4
    $region2: #{tpu_custom_call.1} parent=1 // loop_pre_header
      _
    $region3: #{tpu_custom_call.1} parent=1 // loop_header
      %s17 = sphi 0, %s21
      %p18 = scmp.ge.s32.totalorder %s17, 4
      %s24 = sphi 0, %s36
      %s25 = sphi 0, %s32
      %s26 = sphi 0, %s24
      %s27 = sphi 0, %s25
      %s28 = sphi 0, %s26
      %s29 = sphi 0, %s27
      %s41 = sphi 0, %s43
      %s44 = sphi 0, %s41
      %s45 = sphi 0, %s44
      %s61 = sphi 0, %s45
      %s65 = sphi 0, %s65
      %s67 = sphi 0, %s65
      %s68 = sphi 0, %s67
      %s82 = sphi 0, %s68
      %s86 = sphi 0, %s86
      %s88 = sphi 0, %s86
      %s89 = sphi 0, %s88
      %s103 = sphi 0, %s89
      %s111 = sphi 0, %s113
      %s114 = sphi 0, %s111
      %s115 = sphi 0, %s114
      %s131 = sphi 0, %s115
    $region4: #{tpu_custom_call.1} parent=1 // loop_header_branch
      %20 = sbr.rel (%p18) target = $region8
    $region5: #{tpu_custom_call.1} parent=1 // loop_body
      %s22 = ssub.s32 %s17, 1
      %s23 = ssub.s32 %s17, 2
      %s30 = sadd.s32 1, %s25
      %p31 = scmp.ge.s32.totalorder %s30, 1
      %s32 = scalar_select %p31, 0, %s30
      %s33 = sadd.s32 1, %s24
      %s34 = scalar_select %p31, %s33, %s24
      %p35 = scmp.ge.s32.totalorder %s34, 2
      %s36 = scalar_select %p35, 0, %s34
      %s37 = ssub.s32 %s24, %s36
      %s38 = ssub.s32 %s25, %s32
      %s39 = sor.u32 %s37, %s38
      %p40 = scmp.eq.s32.totalorder %s39, 0
      %s42 = sadd.s32 %s41, 1
      %s43 = scalar_select %p40, %s41, %s42
      %p46 = pneg %p40
      %p47 = scmp.eq.s32.totalorder %s17, 1
      %p48 = por %p46, %p47
      %p49 = scmp.ne.s32.totalorder %s41, %s44
      %p50 = scmp.eq.s32.totalorder %s17, 0
      %p51 = por %p49, %p50
      %p52 = scmp.ne.s32.totalorder %s41, %s44
      %p53 = scmp.eq.s32.totalorder %s22, 1
      %p54 = por %p52, %p53
      %p55 = scmp.ne.s32.totalorder %s44, %s45
      %p56 = scmp.eq.s32.totalorder %s22, 0
      %p57 = por %p55, %p56
      %p58 = scmp.ne.s32.totalorder %s44, %s45
      %p59 = scmp.eq.s32.totalorder %s23, 1
      %p60 = por %p58, %p59
      %p62 = scmp.ne.s32.totalorder %s45, %s61
      %p63 = scmp.eq.s32.totalorder %s23, 0
      %p64 = por %p62, %p63
      %s66 = sadd.s32 %s65, 1
      %p69 = scmp.eq.s32.totalorder %s17, 1
      %p70 = scmp.ne.s32.totalorder %s65, %s67
      %p71 = scmp.eq.s32.totalorder %s17, 0
      %p72 = por %p70, %p71
      %p73 = scmp.ne.s32.totalorder %s65, %s67
      %p74 = scmp.eq.s32.totalorder %s22, 1
      %p75 = por %p73, %p74
      %p76 = scmp.ne.s32.totalorder %s67, %s68
      %p77 = scmp.eq.s32.totalorder %s22, 0
      %p78 = por %p76, %p77
      %p79 = scmp.ne.s32.totalorder %s67, %s68
      %p80 = scmp.eq.s32.totalorder %s23, 1
      %p81 = por %p79, %p80
      %p83 = scmp.ne.s32.totalorder %s68, %s82
      %p84 = scmp.eq.s32.totalorder %s23, 0
      %p85 = por %p83, %p84
      %s87 = sadd.s32 %s86, 1
      %p90 = scmp.eq.s32.totalorder %s17, 1
      %p91 = scmp.ne.s32.totalorder %s86, %s88
      %p92 = scmp.eq.s32.totalorder %s17, 0
      %p93 = por %p91, %p92
      %p94 = scmp.ne.s32.totalorder %s86, %s88
      %p95 = scmp.eq.s32.totalorder %s22, 1
      %p96 = por %p94, %p95
      %p97 = scmp.ne.s32.totalorder %s88, %s89
      %p98 = scmp.eq.s32.totalorder %s22, 0
      %p99 = por %p97, %p98
      %p100 = scmp.ne.s32.totalorder %s88, %s89
      %p101 = scmp.eq.s32.totalorder %s23, 1
      %p102 = por %p100, %p101
      %p104 = scmp.ne.s32.totalorder %s89, %s103
      %p105 = scmp.eq.s32.totalorder %s23, 0
      %p106 = por %p104, %p105
      %s107 = ssub.s32 %s24, %s36
      %s108 = ssub.s32 %s25, %s32
      %s109 = sor.u32 %s107, %s108
      %p110 = scmp.eq.s32.totalorder %s109, 0
      %s112 = sadd.s32 %s111, 1
      %s113 = scalar_select %p110, %s111, %s112
      %p116 = pneg %p110
      %p117 = scmp.eq.s32.totalorder %s17, 1
      %p118 = por %p116, %p117
      %p119 = scmp.ne.s32.totalorder %s111, %s114
      %p120 = scmp.eq.s32.totalorder %s17, 0
      %p121 = por %p119, %p120
      %p122 = scmp.ne.s32.totalorder %s111, %s114
      %p123 = scmp.eq.s32.totalorder %s22, 1
      %p124 = por %p122, %p123
      %p125 = scmp.ne.s32.totalorder %s114, %s115
      %p126 = scmp.eq.s32.totalorder %s22, 0
      %p127 = por %p125, %p126
      %p128 = scmp.ne.s32.totalorder %s114, %s115
      %p129 = scmp.eq.s32.totalorder %s23, 1
      %p130 = por %p128, %p129
      %p132 = scmp.ne.s32.totalorder %s115, %s131
      %p133 = scmp.eq.s32.totalorder %s23, 0
      %p134 = por %p132, %p133
      %p135 = scmp.le.s32.totalorder 1, %s17
      %p136 = scmp.lt.s32.totalorder %s17, 3
      %p137 = pnand %p135, %p136
      %p138 = pneg %p137
      // Predicated region
      $region9: #{tpu_custom_call.1} parent=5 // pred_check
        _
      $region10: #{tpu_custom_call.1} parent=5 // pred_check_branch
        %140 = sbr.rel (%p137) target = $region12
      $region11: #{tpu_custom_call.1} parent=5 // pred_region
        %s141 = ssub.s32 %s17, 1
        // Predicated region
        $region13: #{tpu_custom_call.1} parent=11 // pred_check
          %p142 = pneg %p78
        $region14: #{tpu_custom_call.1} parent=11 // pred_check_branch
          %144 = sbr.rel (%p142) target = $region16
        $region15: #{tpu_custom_call.1} parent=11 // pred_region
          %146 = vsyncadd [#allocation5], 0
          %s148 = sshll.u32 %s1, 4
          %s149 = int_to_ptr.hbm [resolvable:$true] %s148
          %151 = dma.hbm_to_smem %s149, 64, [#allocation7], [#allocation5]
        $region16: #{tpu_custom_call.1} parent=11 // pred_fallthru
          _
        // Predicated region
        $region17: #{tpu_custom_call.1} parent=11 // pred_check
          %p152 = pneg %p99
        $region18: #{tpu_custom_call.1} parent=11 // pred_check_branch
          %154 = sbr.rel (%p152) target = $region20
        $region19: #{tpu_custom_call.1} parent=11 // pred_region
          %156 = vsyncadd [#allocation6], 0
          %s158 = sshll.u32 %s2, 4
          %s159 = int_to_ptr.vmem [resolvable:$true] %s158
          %161 = dma.vmem_to_smem %s159, 16, [#allocation8], [#allocation6]
        $region20: #{tpu_custom_call.1} parent=11 // pred_fallthru
          _
      $region12: #{tpu_custom_call.1} parent=5 // pred_fallthru
        _
      %p162 = scmp.lt.s32.totalorder %s17, 2
      // Predicated region
      $region21: #{tpu_custom_call.1} parent=5 // pred_check
        %p163 = pneg %p162
      $region22: #{tpu_custom_call.1} parent=5 // pred_check_branch
        %165 = sbr.rel (%p163) target = $region24
      $region23: #{tpu_custom_call.1} parent=5 // pred_region
        // Predicated region
        $region25: #{tpu_custom_call.1} parent=23 // pred_check
          %p166 = pneg %p51
        $region26: #{tpu_custom_call.1} parent=23 // pred_check_branch
          %168 = sbr.rel (%p166) target = $region28
        $region27: #{tpu_custom_call.1} parent=23 // pred_region
          %s169 = sand.u32 %s41, 1
          %s170 = scalar_lea.sflag [#allocation3], %s169
          %s171 = sand.u32 %s41, 1
          %s172 = smul.addr %s171, 8
          %s173 = scalar_lea.vmem [#allocation2], %s172
          %s174 = smul.u32 2, %s25
          %176 = vsyncadd %s170, 0
          %s177 = smul.addr %s24, 2
          %s178 = sadd.s32 %s174, %s177
          %s179 = smul.addr %s178, 4
          %s180 = scalar_lea.hbm %s0, %s179
          %s182 = sshll.u32 %s180, 4
          %s183 = int_to_ptr.hbm [resolvable:$true] %s182
          %s184 = sshll.u32 %s173, 4
          %s185 = int_to_ptr.vmem [resolvable:$true] %s184
          %187 = dma.hbm_to_vmem [thread:$0]  %s183, 128, %s185, %s170
        $region28: #{tpu_custom_call.1} parent=23 // pred_fallthru
          _
      $region24: #{tpu_custom_call.1} parent=5 // pred_fallthru
        _
      %p188 = scmp.le.s32.totalorder 1, %s17
      %p189 = scmp.lt.s32.totalorder %s17, 3
      %p190 = pnand %p188, %p189
      %p191 = pneg %p190
      // Predicated region
      $region29: #{tpu_custom_call.1} parent=5 // pred_check
        _
      $region30: #{tpu_custom_call.1} parent=5 // pred_check_branch
        %193 = sbr.rel (%p190) target = $region32
      $region31: #{tpu_custom_call.1} parent=5 // pred_region
        %s194 = ssub.s32 %s17, 1
        %s195 = sand.u32 %s44, 1
        %s196 = scalar_lea.sflag [#allocation3], %s195
        %s197 = sand.u32 %s44, 1
        %s198 = smul.addr %s197, 8
        %s199 = scalar_lea.vmem [#allocation2], %s198
        // Predicated region
        $region33: #{tpu_custom_call.1} parent=31 // pred_check
          %p200 = pneg %p57
        $region34: #{tpu_custom_call.1} parent=31 // pred_check_branch
          %202 = sbr.rel (%p200) target = $region36
        $region35: #{tpu_custom_call.1} parent=31 // pred_region
          %204 = dma.done %s196, 128
        $region36: #{tpu_custom_call.1} parent=31 // pred_fallthru
          _
        // Predicated region
        $region37: #{tpu_custom_call.1} parent=31 // pred_check
          %p205 = pneg %p78
        $region38: #{tpu_custom_call.1} parent=31 // pred_check_branch
          %207 = sbr.rel (%p205) target = $region40
        $region39: #{tpu_custom_call.1} parent=31 // pred_region
          %209 = dma.done [#allocation5], 64
        $region40: #{tpu_custom_call.1} parent=31 // pred_fallthru
          _
        // Predicated region
        $region41: #{tpu_custom_call.1} parent=31 // pred_check
          %p210 = pneg %p99
        $region42: #{tpu_custom_call.1} parent=31 // pred_check_branch
          %212 = sbr.rel (%p210) target = $region44
        $region43: #{tpu_custom_call.1} parent=31 // pred_region
          %214 = dma.done [#allocation6], 16
        $region44: #{tpu_custom_call.1} parent=31 // pred_fallthru
          _
        %215 = sfence
        %s216 = sand.u32 %s44, 1
        %s217 = scalar_lea.sflag [#allocation3], %s216
        %s218 = sand.u32 %s44, 1
        %s219 = smul.addr %s218, 8
        %s220 = scalar_lea.vmem [#allocation2], %s219
        %p221 = pneg %p57
        %p222 = pneg %p54
        %p223 = pneg %p78
        %p224 = pneg %p75
        %p225 = pneg %p99
        %p226 = pneg %p96
        %p227 = pneg %p127
        %p228 = pneg %p124
        %s229 = sand.u32 %s114, 1
        %s230 = scalar_lea.sflag [#allocation4], %s229
        %s231 = sand.u32 %s114, 1
        %s232 = smul.addr %s231, 8
        %s233 = scalar_lea.vmem [#allocation9], %s232
        %s234 = smul.u32 2, %s27
        %s235 = smul.u32 2, %s27
        %v236 = vld [vmem:[%s199] ss:$4 sm:$0x3]
        %s237 = scalar_lea.vmem %s199, 1 [#allocation2]
        %v238 = vld [vmem:[%s237] ss:$4 sm:$0x3]
        %s239 = scalar_lea.vmem %s199, 2 [#allocation2]
        %v240 = vld [vmem:[%s239] ss:$4 sm:$0x3]
        %s241 = scalar_lea.vmem %s199, 3 [#allocation2]
        %v242 = vld [vmem:[%s241] ss:$4 sm:$0x3]
        %s243 = sld [smem:[#allocation7]]
        %v244 = vstv %s243
        %v245 = vmul.f32 %v236, %v244
        %s246 = sld [smem:[#allocation8]]
        %v247 = vstv %s246
        %v248 = vadd.f32 %v245, %v247
        %s249 = sld [smem:[#allocation7 + $0x1]]
        %v250 = vstv %s249
        %v251 = vmul.f32 %v250, %v238
        %v252 = vadd.f32 %v248, %v251
        %s253 = sld [smem:[#allocation7 + $0x2]]
        %v254 = vstv %s253
        %v255 = vmul.f32 %v254, %v240
        %v256 = vadd.f32 %v252, %v255
        %s257 = sld [smem:[#allocation7 + $0x3]]
        %v258 = vstv %s257
        %v259 = vmul.f32 %v258, %v242
        %v260 = vadd.f32 %v256, %v259
        %v261 = vlaneseq
        %vm262 = vcmp.ge.s32.totalorder %v261, 0
        %vm263 = vcmp.lt.s32.totalorder %v261, 256
        %vm264 = vmand %vm262, %vm263
        %265 = vst.msk [vmem:[%s233] ss:$4 sm:$0x3] %vm264, %v260
        %s266 = sld [smem:[#allocation7 + $0x80]]
        %v267 = vstv %s266
        %v268 = vmul.f32 %v236, %v267
        %s269 = sld [smem:[#allocation8 + $0x1]]
        %v270 = vstv %s269
        %v271 = vadd.f32 %v268, %v270
        %s272 = sld [smem:[#allocation7 + $0x81]]
        %v273 = vstv %s272
        %v274 = vmul.f32 %v273, %v238
        %v275 = vadd.f32 %v271, %v274
        %s276 = sld [smem:[#allocation7 + $0x82]]
        %v277 = vstv %s276
        %v278 = vmul.f32 %v277, %v240
        %v279 = vadd.f32 %v275, %v278
        %s280 = sld [smem:[#allocation7 + $0x83]]
        %v281 = vstv %s280
        %v282 = vmul.f32 %v281, %v242
        %v283 = vadd.f32 %v279, %v282
        %s284 = scalar_lea.vmem %s233, 1 [#allocation9]
        %285 = vst.msk [vmem:[%s284] ss:$4 sm:$0x3] %vm264, %v283
        %s286 = sld [smem:[#allocation7 + $0x100]]
        %v287 = vstv %s286
        %v288 = vmul.f32 %v236, %v287
        %s289 = sld [smem:[#allocation8 + $0x2]]
        %v290 = vstv %s289
        %v291 = vadd.f32 %v288, %v290
        %s292 = sld [smem:[#allocation7 + $0x101]]
        %v293 = vstv %s292
        %v294 = vmul.f32 %v293, %v238
        %v295 = vadd.f32 %v291, %v294
        %s296 = sld [smem:[#allocation7 + $0x102]]
        %v297 = vstv %s296
        %v298 = vmul.f32 %v297, %v240
        %v299 = vadd.f32 %v295, %v298
        %s300 = sld [smem:[#allocation7 + $0x103]]
        %v301 = vstv %s300
        %v302 = vmul.f32 %v301, %v242
        %v303 = vadd.f32 %v299, %v302
        %s304 = scalar_lea.vmem %s233, 2 [#allocation9]
        %305 = vst.msk [vmem:[%s304] ss:$4 sm:$0x3] %vm264, %v303
        %s306 = sld [smem:[#allocation7 + $0x180]]
        %v307 = vstv %s306
        %v308 = vmul.f32 %v236, %v307
        %s309 = sld [smem:[#allocation8 + $0x3]]
        %v310 = vstv %s309
        %v311 = vadd.f32 %v308, %v310
        %s312 = sld [smem:[#allocation7 + $0x181]]
        %v313 = vstv %s312
        %v314 = vmul.f32 %v313, %v238
        %v315 = vadd.f32 %v311, %v314
        %s316 = sld [smem:[#allocation7 + $0x182]]
        %v317 = vstv %s316
        %v318 = vmul.f32 %v317, %v240
        %v319 = vadd.f32 %v315, %v318
        %s320 = sld [smem:[#allocation7 + $0x183]]
        %v321 = vstv %s320
        %v322 = vmul.f32 %v321, %v242
        %v323 = vadd.f32 %v319, %v322
        %s324 = scalar_lea.vmem %s233, 3 [#allocation9]
        %325 = vst.msk [vmem:[%s324] ss:$4 sm:$0x3] %vm264, %v323
        %s326 = sand.u32 %s114, 1
        %s327 = scalar_lea.sflag [#allocation4], %s326
        %s328 = sand.u32 %s114, 1
        %s329 = smul.addr %s328, 8
        %s330 = scalar_lea.vmem [#allocation9], %s329
        // Predicated region
        $region45: #{tpu_custom_call.1} parent=31 // pred_check
          %p331 = pneg %p124
        $region46: #{tpu_custom_call.1} parent=31 // pred_check_branch
          %333 = sbr.rel (%p331) target = $region48
        $region47: #{tpu_custom_call.1} parent=31 // pred_region
          %s334 = smul.u32 2, %s27
          %336 = vsyncadd %s327, 0
          %s337 = smul.addr %s26, 2
          %s338 = sadd.s32 %s334, %s337
          %s339 = smul.addr %s338, 4
          %s340 = scalar_lea.hbm %s3, %s339
          %s342 = sshll.u32 %s330, 4
          %s343 = int_to_ptr.vmem [resolvable:$true] %s342
          %s344 = sshll.u32 %s340, 4
          %s345 = int_to_ptr.hbm [resolvable:$true] %s344
          %347 = dma.vmem_to_hbm [thread:$0]  %s343, 128, %s345, %s327
        $region48: #{tpu_custom_call.1} parent=31 // pred_fallthru
          _
      $region32: #{tpu_custom_call.1} parent=5 // pred_fallthru
        _
      %p348 = scmp.le.s32.totalorder 2, %s17
      // Predicated region
      $region49: #{tpu_custom_call.1} parent=5 // pred_check
        %p349 = pneg %p348
      $region50: #{tpu_custom_call.1} parent=5 // pred_check_branch
        %351 = sbr.rel (%p349) target = $region52
      $region51: #{tpu_custom_call.1} parent=5 // pred_region
        %s352 = ssub.s32 %s17, 2
        // Predicated region
        $region53: #{tpu_custom_call.1} parent=51 // pred_check
          %p353 = pneg %p130
        $region54: #{tpu_custom_call.1} parent=51 // pred_check_branch
          %355 = sbr.rel (%p353) target = $region56
        $region55: #{tpu_custom_call.1} parent=51 // pred_region
          %s356 = sand.u32 %s115, 1
          %s357 = scalar_lea.sflag [#allocation4], %s356
          %s358 = sand.u32 %s115, 1
          %s359 = smul.addr %s358, 8
          %s360 = scalar_lea.vmem [#allocation9], %s359
          %362 = dma.done %s357, 128
        $region56: #{tpu_custom_call.1} parent=51 // pred_fallthru
          _
      $region52: #{tpu_custom_call.1} parent=5 // pred_fallthru
        _
    $region6: #{tpu_custom_call.1} parent=1 // loop_footer
      %s21 = sadd.s32 1, %s17
    $region7: #{tpu_custom_call.1} parent=1 // loop_footer_branch
      %16 = sbr.rel target = $region3
    $region8: #{tpu_custom_call.1} parent=1 // loop_exit
      _
    %363 = vsyncpa [#allocation3], 1
    %s364 = scalar_lea.sflag [#allocation3], 1
    %365 = vsyncpa %s364, 1
    %366 = vsyncpa [#allocation4], 1
    %s367 = scalar_lea.sflag [#allocation4], 1
    %368 = vsyncpa %s367, 1
    %369 = vsyncpa [#allocation5], 1
    %s370 = scalar_lea.sflag [#allocation5], 1
    %371 = vsyncpa %s370, 1
    %372 = vsyncpa [#allocation6], 1
    %s373 = scalar_lea.sflag [#allocation6], 1
    %374 = vsyncpa %s373, 1

</llo_original>
